<compile_context>
chip_gen: v7x
topology: tpu7x:2x2x1
jax: 0.10.0
libtpu: 0.0.40
codegen_flags: <defaults>
</compile_context>

<pallas_src>
import jax
import jax.numpy as jnp
from jax.experimental import pallas as pl
from jax.experimental.pallas import tpu as pltpu


def _build_pe_table(d_model: int, max_len: int) -> jnp.ndarray:
    """Sinusoidal positional-encoding buffer, shape (max_len, d_model), f32."""
    position = jnp.arange(0, max_len, dtype=jnp.float32)[:, None]
    div_term = jnp.exp(
        jnp.arange(0, d_model, 2, dtype=jnp.float32)
        * (-jnp.log(jnp.float32(10000.0)) / d_model)
    )
    pe = jnp.zeros((max_len, d_model), dtype=jnp.float32)
    pe = pe.at[:, 0::2].set(jnp.sin(position * div_term))
    pe = pe.at[:, 1::2].set(jnp.cos(position * div_term))
    return pe


def _pe_add_kernel(x_ref, pe_ref, o_ref):
    # x_ref/o_ref: (Bo, R, TILE_M); pe_ref: (1, R_pe, TILE_M) with R_pe in {1, R}.
    # Pure VPU broadcast-add; no per-step layout ops.
    o_ref[...] = x_ref[...] + pe_ref[...]


def _vmem_capacity_bytes() -> int:
    try:
        return int(pltpu.get_tpu_info().vmem_capacity_bytes)
    except Exception:
        return 64 << 20  # conservative: v7x per-TC physical VMEM


def _choose_fold(B: int, N: int, sublane: int) -> int:
    """Smallest G = k*sublane dividing N with (N//G) a multiple of 128.

    Folding G groups of the flattened sequence onto the sublane axis fixes the
    vreg / store-slot under-fill that otherwise binds perf when B < sublane."""
    if B >= sublane:
        return 1
    g = sublane
    while g * 128 <= N:
        if N % g == 0 and (N // g) % 128 == 0:
            return g
        g += sublane
    return 1


def _pick_tile_m(m: int, max_tile: int) -> int:
    """Largest divisor of m that is a multiple of 128 and <= max_tile, preferring
    a choice with an even tile count (>= 2) so the single 'parallel' grid axis
    balances across v7x's two TensorCores."""
    assert m % 128 == 0
    cap = min(m, max(128, (max_tile // 128) * 128))
    candidates = [c for c in range(128, cap + 1, 128) if m % c == 0]
    even = [c for c in candidates if (m // c) % 2 == 0]
    return even[-1] if even else candidates[-1]


class PositionalEncoding:
    """Pallas-TPU port of the PyTorch PositionalEncoding module (dropout p=0.0)."""

    def __init__(self, d_model: int, max_len: int, dropout: float = 0.0,
                 dtype=jnp.float32):
        assert dropout == 0.0
        # TODO(synk): for p>0 training-mode dropout use pltpu.prng_seed +
        # pltpu.stateful_bernoulli inside the kernel.
        self.d_model = d_model
        self.max_len = max_len
        # pe precomputed ONCE in the kernel dtype: no per-call convert/copy op.
        self.pe = _build_pe_table(d_model, max_len).astype(dtype)

    def __call__(self, x, *, donate_x: bool = False):
        B, S, D = x.shape
        assert D == self.d_model and S <= self.max_len
        pe = self.pe if self.pe.dtype == x.dtype else self.pe.astype(x.dtype)

        N = S * D
        itemsize = x.dtype.itemsize
        sublane = {4: 8, 2: 16, 1: 32}.get(itemsize, 8)
        pe_flat = pe[:S, :].reshape(-1)  # (N,)

        pad = 0
        G = _choose_fold(B, N, sublane)
        if G > 1:
            # Sublane-fold path: (B, G, M); pe broadcast along the leading dim.
            Bo, R, M, r_pe = B, G, N // G, G
            x3 = x.reshape(Bo, R, M)
            pe3 = pe_flat.reshape(1, R, M)
        else:
            # Plain lane-dense path: (1, B, M); pad M to a multiple of 128 so
            # blocks stay bounded / pipelined even for ragged S*D.
            Bo, R, M, r_pe = 1, B, N, 1
            pad = (-N) % 128
            x3 = x.reshape(1, B, N)
            pe3 = pe_flat.reshape(1, 1, N)
            if pad:
                x3 = jnp.pad(x3, ((0, 0), (0, 0), (0, pad)))
                pe3 = jnp.pad(pe3, ((0, 0), (0, 0), (0, pad)))
                M = N + pad

        # --- tile size & per-generation VMEM budget ---
        r_pad = -(-R // sublane) * sublane
        r_pe_pad = -(-r_pe // sublane) * sublane
        row_bytes_x = Bo * r_pad * itemsize

        vmem_cap = _vmem_capacity_bytes()
        # Double-buffered pipeline holds 2 * (x + out + pe) blocks; target ~8 MiB
        # x blocks but keep the footprint well under the per-TC VMEM.
        target_block = max(128 * row_bytes_x,
                           min(8 << 20, int(0.70 * vmem_cap) // 6))
        tile_m = _pick_tile_m(M, max(128, target_block // row_bytes_x))
        num_tiles = M // tile_m

        footprint = 2 * (2 * Bo * r_pad + r_pe_pad) * tile_m * itemsize
        vmem_limit = int(min(vmem_cap, max(footprint + (8 << 20), 32 << 20)))

        out3 = pl.pallas_call(
            _pe_add_kernel,
            out_shape=jax.ShapeDtypeStruct((Bo, R, M), x.dtype),
            grid_spec=pltpu.PrefetchScalarGridSpec(
                num_scalar_prefetch=0,
                grid=(num_tiles,),
                in_specs=[
                    pl.BlockSpec((Bo, R, tile_m), lambda t: (0, 0, t)),   # x tile
                    pl.BlockSpec((1, r_pe, tile_m), lambda t: (0, 0, t)),  # pe tile (fetched once)
                ],
                out_specs=pl.BlockSpec((Bo, R, tile_m), lambda t: (0, 0, t)),
            ),
            compiler_params=pltpu.CompilerParams(
                dimension_semantics=("parallel",),
                vmem_limit_bytes=vmem_limit,
            ),
            cost_estimate=pl.CostEstimate(
                flops=B * N,
                transcendentals=0,
                bytes_accessed=(2 * B * N + N) * itemsize,
            ),
            # Only alias (in-place add) when the caller actually donates x;
            # otherwise XLA would insert a defensive full copy of x.
            input_output_aliases=({0: 0} if donate_x else {}),
        )(x3, pe3)

        if pad:
            out3 = out3[..., :N]
        return out3.reshape(B, S, D)


if __name__ == "__main__":
    key = jax.random.PRNGKey(0)
    k1, k2, k3, k4 = jax.random.split(key, 4)

    # --- Case 1: f32, module-like small shape (no-fold path, D=32 lane-dense via flatten) ---
    B, S, D = 2, 8, 32
    mod = PositionalEncoding(d_model=D, max_len=16, dtype=jnp.float32)
    x = jax.random.normal(k1, (B, S, D), dtype=jnp.float32)
    ref = x + mod.pe[None, :S, :]                      # reference BEFORE any donated call
    out = jax.block_until_ready(mod(x))
    assert out.shape == (B, S, D)
    assert jnp.allclose(out, ref, atol=1e-6), "case1 f32 mismatch"
    out_d = jax.block_until_ready(mod(x, donate_x=True))   # exercise the aliased path
    assert jnp.allclose(out_d, ref, atol=1e-6), "case1 donate mismatch"

    # --- Case 2: bf16 end-to-end (pe stored in bf16 at init; add done in bf16) ---
    B2, S2, D2 = 2, 16, 64
    mod_b = PositionalEncoding(d_model=D2, max_len=32, dtype=jnp.bfloat16)
    xb = jax.random.normal(k2, (B2, S2, D2), jnp.float32).astype(jnp.bfloat16)
    ref_b = (xb.astype(jnp.float32)
             + mod_b.pe.astype(jnp.float32)[None, :S2, :]).astype(jnp.bfloat16)
    out_b = jax.block_until_ready(mod_b(xb))
    assert out_b.dtype == jnp.bfloat16 and out_b.shape == (B2, S2, D2)
    assert jnp.allclose(out_b.astype(jnp.float32), ref_b.astype(jnp.float32),
                        atol=1e-1), "case2 bf16 mismatch"

    # --- Case 3: f32 small batch -> sublane-fold path (B=2 < 8, G=8, M=256) ---
    B3, S3, D3 = 2, 32, 64
    mod3 = PositionalEncoding(d_model=D3, max_len=64, dtype=jnp.float32)
    x3 = jax.random.normal(k3, (B3, S3, D3), dtype=jnp.float32)
    ref3 = x3 + mod3.pe[None, :S3, :]
    out3 = jax.block_until_ready(mod3(x3))
    assert jnp.allclose(out3, ref3, atol=1e-6), "case3 fold mismatch"

    # --- Case 4: non-128-aligned S*D -> padded lane path (S*D = 120) ---
    B4, S4, D4 = 2, 5, 24
    mod4 = PositionalEncoding(d_model=D4, max_len=8, dtype=jnp.float32)
    x4 = jax.random.normal(k4, (B4, S4, D4), dtype=jnp.float32)
    ref4 = x4 + mod4.pe[None, :S4, :]
    out4 = jax.block_until_ready(mod4(x4))
    assert out4.shape == (B4, S4, D4)
    assert jnp.allclose(out4, ref4, atol=1e-6), "case4 padded mismatch"

    print("KERNEL_OK")
</pallas_src>

<mosaic_0001>
module attributes {stable_mosaic.version = 11 : i64} {
  func.func @_pe_add_kernel(%arg0: i32, %arg1: memref<1x2x128xf32, #tpu.memory_space<vmem>>, %arg2: memref<1x1x128xf32, #tpu.memory_space<vmem>>, %arg3: memref<1x2x128xf32, #tpu.memory_space<vmem>>) attributes {dimension_semantics = [#tpu.dimension_semantics<parallel>], iteration_bounds = array<i64: 2>, scalar_prefetch = 0 : i64, scratch_operands = 0 : i64, tpu.core_type = #tpu.core_type<tc>, window_params = [{transform_indices = @transform_0, window_bounds = array<i64: 1, 2, 128>}, {transform_indices = @transform_1, window_bounds = array<i64: 1, 1, 128>}, {transform_indices = @transform_2, window_bounds = array<i64: 1, 2, 128>}]} {
    %c0 = arith.constant 0 : index
    %c0_0 = arith.constant 0 : index
    %c0_1 = arith.constant 0 : index
    %0 = vector.load %arg1[%c0, %c0_0, %c0_1] : memref<1x2x128xf32, #tpu.memory_space<vmem>>, vector<1x2x128xf32>
    %c0_2 = arith.constant 0 : index
    %c0_3 = arith.constant 0 : index
    %c0_4 = arith.constant 0 : index
    %1 = vector.load %arg2[%c0_2, %c0_3, %c0_4] : memref<1x1x128xf32, #tpu.memory_space<vmem>>, vector<1x1x128xf32>
    %2 = vector.broadcast %1 : vector<1x1x128xf32> to vector<1x2x128xf32>
    %3 = arith.addf %0, %2 : vector<1x2x128xf32>
    %c0_5 = arith.constant 0 : index
    %c0_6 = arith.constant 0 : index
    %c0_7 = arith.constant 0 : index
    %4 = vector.load %arg3[%c0_5, %c0_6, %c0_7] : memref<1x2x128xf32, #tpu.memory_space<vmem>>, vector<1x2x128xf32>
    tpu.vector_store %arg3[%c0_5, %c0_6, %c0_7], %3 {strides = array<i32>} : memref<1x2x128xf32, #tpu.memory_space<vmem>>, vector<1x2x128xf32>,
    return
  }
  func.func @transform_0(%arg0: i32) -> (i32, i32, i32) {
    %c0_i32 = arith.constant 0 : i32
    %c0_i32_0 = arith.constant 0 : i32
    %c0_i32_1 = arith.constant 0 : i32
    return %c0_i32, %c0_i32_0, %arg0 : i32, i32, i32
  }
  func.func @transform_1(%arg0: i32) -> (i32, i32, i32) {
    %c0_i32 = arith.constant 0 : i32
    %c0_i32_0 = arith.constant 0 : i32
    %c0_i32_1 = arith.constant 0 : i32
    return %c0_i32, %c0_i32_0, %arg0 : i32, i32, i32
  }
  func.func @transform_2(%arg0: i32) -> (i32, i32, i32) {
    %c0_i32 = arith.constant 0 : i32
    %c0_i32_0 = arith.constant 0 : i32
    %c0_i32_1 = arith.constant 0 : i32
    return %c0_i32, %c0_i32_0, %arg0 : i32, i32, i32
  }
}

</mosaic_0001>

<llo_original>
// kernel: tpu_custom_call.1
$region0: #{tpu_custom_call.1}
  #allocation0 [shape = 'u32[]', space=smem, size = 0x4, offset = 0x4, fixed_abs, tag = 'smem constant byte address 0x4 - core index']
  #allocation1 [shape = 'u32[144,128]{1,0:T(1,128)}', space=vmem, size = 0x12000, scoped, tag = 'internal scratch']
  %s0 = inlined_call_operand.hbm [shape: f32[1,2,256], index: 0, kind: input, shape index: {}]
  %s1 = inlined_call_operand.vmem [shape: f32[1,1,256], index: 1, kind: input, shape index: {}]
  %s2 = inlined_call_operand.hbm [shape: f32[1,2,256], index: 2, kind: output, shape index: {}]
  %s3 = sld [smem:[#allocation0]]
  $region45: #{tpu_custom_call.1} parent=0
    _
  %s5 = ssub.s32 1, %s3
  %s6 = scalar_select 0, %s5, %s3
  $region1: #{tpu_custom_call.1} parent=0
    #allocation2 [shape = 'u8[2048]{0}', space=vmem, size = 0x800, scoped, tag = 'input window, operand 0']
    #allocation3 [shape = 's32[2]{0}', space=sflag, size = 0x8, scoped, tag = 'scoped memory for tpu_custom_call.1']
    #allocation4 [shape = 's32[2]{0}', space=sflag, size = 0x8, scoped, tag = 'scoped memory for tpu_custom_call.1']
    #allocation5 [shape = 'u8[2048]{0}', space=vmem, size = 0x800, scoped, tag = 'output window, operand 0']
    %7 = vsyncpa [#allocation3], 0
    %s8 = scalar_lea.sflag [#allocation3], 1
    %9 = vsyncpa %s8, 0
    %10 = vsyncpa [#allocation4], 0
    %s11 = scalar_lea.sflag [#allocation4], 1
    %12 = vsyncpa %s11, 0
    loop: start=0, step=1, limit=4
    $region2: #{tpu_custom_call.1} parent=1 // loop_pre_header
      _
    $region3: #{tpu_custom_call.1} parent=1 // loop_header
      %s14 = sphi 0, %s18
      %p15 = scmp.ge.s32.totalorder %s14, 4
      %s24 = sphi 0, %s26
      %s27 = sphi 0, %s24
      %s28 = sphi 0, %s27
      %s44 = sphi 0, %s28
      %s50 = sphi 0, %s52
      %s53 = sphi 0, %s50
      %s54 = sphi 0, %s53
      %s70 = sphi 0, %s54
      %s76 = sphi 0, %s78
      %s79 = sphi 0, %s76
      %s80 = sphi 0, %s79
      %s96 = sphi 0, %s80
    $region4: #{tpu_custom_call.1} parent=1 // loop_header_branch
      %17 = sbr.rel (%p15) target = $region8
    $region5: #{tpu_custom_call.1} parent=1 // loop_body
      %s19 = ssub.s32 %s14, 1
      %s20 = ssub.s32 %s14, 2
      %s21 = sadd.s32 %s14, 1
      %s22 = ssub.s32 %s14, %s21
      %p23 = scmp.eq.s32.totalorder %s22, 0
      %s25 = sadd.s32 %s24, 1
      %s26 = scalar_select %p23, %s24, %s25
      %p29 = pneg %p23
      %p30 = scmp.eq.s32.totalorder %s14, 1
      %p31 = por %p29, %p30
      %p32 = scmp.ne.s32.totalorder %s24, %s27
      %p33 = scmp.eq.s32.totalorder %s14, 0
      %p34 = por %p32, %p33
      %p35 = scmp.ne.s32.totalorder %s24, %s27
      %p36 = scmp.eq.s32.totalorder %s19, 1
      %p37 = por %p35, %p36
      %p38 = scmp.ne.s32.totalorder %s27, %s28
      %p39 = scmp.eq.s32.totalorder %s19, 0
      %p40 = por %p38, %p39
      %p41 = scmp.ne.s32.totalorder %s27, %s28
      %p42 = scmp.eq.s32.totalorder %s20, 1
      %p43 = por %p41, %p42
      %p45 = scmp.ne.s32.totalorder %s28, %s44
      %p46 = scmp.eq.s32.totalorder %s20, 0
      %p47 = por %p45, %p46
      %s48 = ssub.s32 %s14, %s21
      %p49 = scmp.eq.s32.totalorder %s48, 0
      %s51 = sadd.s32 %s50, 1
      %s52 = scalar_select %p49, %s50, %s51
      %p55 = pneg %p49
      %p56 = scmp.eq.s32.totalorder %s14, 1
      %p57 = por %p55, %p56
      %p58 = scmp.ne.s32.totalorder %s50, %s53
      %p59 = scmp.eq.s32.totalorder %s14, 0
      %p60 = por %p58, %p59
      %p61 = scmp.ne.s32.totalorder %s50, %s53
      %p62 = scmp.eq.s32.totalorder %s19, 1
      %p63 = por %p61, %p62
      %p64 = scmp.ne.s32.totalorder %s53, %s54
      %p65 = scmp.eq.s32.totalorder %s19, 0
      %p66 = por %p64, %p65
      %p67 = scmp.ne.s32.totalorder %s53, %s54
      %p68 = scmp.eq.s32.totalorder %s20, 1
      %p69 = por %p67, %p68
      %p71 = scmp.ne.s32.totalorder %s54, %s70
      %p72 = scmp.eq.s32.totalorder %s20, 0
      %p73 = por %p71, %p72
      %s74 = ssub.s32 %s14, %s21
      %p75 = scmp.eq.s32.totalorder %s74, 0
      %s77 = sadd.s32 %s76, 1
      %s78 = scalar_select %p75, %s76, %s77
      %p81 = pneg %p75
      %p82 = scmp.eq.s32.totalorder %s14, 1
      %p83 = por %p81, %p82
      %p84 = scmp.ne.s32.totalorder %s76, %s79
      %p85 = scmp.eq.s32.totalorder %s14, 0
      %p86 = por %p84, %p85
      %p87 = scmp.ne.s32.totalorder %s76, %s79
      %p88 = scmp.eq.s32.totalorder %s19, 1
      %p89 = por %p87, %p88
      %p90 = scmp.ne.s32.totalorder %s79, %s80
      %p91 = scmp.eq.s32.totalorder %s19, 0
      %p92 = por %p90, %p91
      %p93 = scmp.ne.s32.totalorder %s79, %s80
      %p94 = scmp.eq.s32.totalorder %s20, 1
      %p95 = por %p93, %p94
      %p97 = scmp.ne.s32.totalorder %s80, %s96
      %p98 = scmp.eq.s32.totalorder %s20, 0
      %p99 = por %p97, %p98
      %p100 = scmp.le.s32.totalorder 1, %s14
      %p101 = scmp.lt.s32.totalorder %s14, 3
      %p102 = pnand %p100, %p101
      %p103 = pneg %p102
      // Predicated region
      $region9: #{tpu_custom_call.1} parent=5 // pred_check
        _
      $region10: #{tpu_custom_call.1} parent=5 // pred_check_branch
        %105 = sbr.rel (%p102) target = $region12
      $region11: #{tpu_custom_call.1} parent=5 // pred_region
        %s106 = ssub.s32 %s14, 1
      $region12: #{tpu_custom_call.1} parent=5 // pred_fallthru
        _
      %p107 = scmp.lt.s32.totalorder %s14, 2
      // Predicated region
      $region13: #{tpu_custom_call.1} parent=5 // pred_check
        %p108 = pneg %p107
      $region14: #{tpu_custom_call.1} parent=5 // pred_check_branch
        %110 = sbr.rel (%p108) target = $region16
      $region15: #{tpu_custom_call.1} parent=5 // pred_region
        // Predicated region
        $region17: #{tpu_custom_call.1} parent=15 // pred_check
          %p111 = pneg %p34
        $region18: #{tpu_custom_call.1} parent=15 // pred_check_branch
          %113 = sbr.rel (%p111) target = $region20
        $region19: #{tpu_custom_call.1} parent=15 // pred_region
          %s114 = sand.u32 %s24, 1
          %s115 = scalar_lea.sflag [#allocation3], %s114
          %s116 = sand.u32 %s24, 1
          %s117 = smul.addr %s116, 2
          %s118 = scalar_lea.vmem [#allocation2], %s117
          %s120 = ssub.s32 32, 32
          %121 = vsyncadd %s115, %s120
          %s122 = smul.addr %s14, 32
          %s123 = scalar_lea.hbm %s0, %s122
          %s125 = sshll.u32 %s118, 4
          %s126 = int_to_ptr.vmem [resolvable:$true] %s125
          %128 = dma.hbm_to_vmem [thread:$0]  %s123, 32, %s126, %s115
        $region20: #{tpu_custom_call.1} parent=15 // pred_fallthru
          _
        // Predicated region
        $region21: #{tpu_custom_call.1} parent=15 // pred_check
          %p129 = pneg %p60
        $region22: #{tpu_custom_call.1} parent=15 // pred_check_branch
          %131 = sbr.rel (%p129) target = $region24
        $region23: #{tpu_custom_call.1} parent=15 // pred_region
          %p132 = scmp.lt.s32.totalorder %s14, 1
          %s133 = scalar_select %p132, %s14, 1
          %s134 = scalar_lea.vmem %s1, %s133
        $region24: #{tpu_custom_call.1} parent=15 // pred_fallthru
          _
      $region16: #{tpu_custom_call.1} parent=5 // pred_fallthru
        _
      %p135 = scmp.le.s32.totalorder 1, %s14
      %p136 = scmp.lt.s32.totalorder %s14, 3
      %p137 = pnand %p135, %p136
      %p138 = pneg %p137
      // Predicated region
      $region25: #{tpu_custom_call.1} parent=5 // pred_check
        _
      $region26: #{tpu_custom_call.1} parent=5 // pred_check_branch
        %140 = sbr.rel (%p137) target = $region28
      $region27: #{tpu_custom_call.1} parent=5 // pred_region
        %s141 = ssub.s32 %s14, 1
        %s142 = sand.u32 %s27, 1
        %s143 = scalar_lea.sflag [#allocation3], %s142
        %s144 = sand.u32 %s27, 1
        %s145 = smul.addr %s144, 2
        %s146 = scalar_lea.vmem [#allocation2], %s145
        // Predicated region
        $region29: #{tpu_custom_call.1} parent=27 // pred_check
          %p147 = pneg %p40
        $region30: #{tpu_custom_call.1} parent=27 // pred_check_branch
          %149 = sbr.rel (%p147) target = $region32
        $region31: #{tpu_custom_call.1} parent=27 // pred_region
          %150 = dma.done %s143, 32
        $region32: #{tpu_custom_call.1} parent=27 // pred_fallthru
          _
        %s151 = sand.u32 %s27, 1
        %s152 = scalar_lea.sflag [#allocation3], %s151
        %s153 = sand.u32 %s27, 1
        %s154 = smul.addr %s153, 2
        %s155 = scalar_lea.vmem [#allocation2], %s154
        %p156 = pneg %p40
        %p157 = pneg %p37
        %p158 = scmp.lt.s32.totalorder %s19, 1
        %s159 = scalar_select %p158, %s19, 1
        %s160 = scalar_lea.vmem %s1, %s159
        %p161 = pneg %p66
        %p162 = pneg %p63
        %p163 = pneg %p92
        %p164 = pneg %p89
        %s165 = sand.u32 %s79, 1
        %s166 = scalar_lea.sflag [#allocation4], %s165
        %s167 = sand.u32 %s79, 1
        %s168 = smul.addr %s167, 2
        %s169 = scalar_lea.vmem [#allocation5], %s168
        %p170 = scmp.lt.s32.totalorder %s19, 1
        %s171 = scalar_select %p170, %s19, 1
        %s172 = scalar_lea.vmem %s1, %s171
        %v173 = vld [vmem:[%s146] sm:$0x3]
        %v174 = vld [vmem:[%s172] sm:$0x1]
        %v176 = vlaneseq
        %v177 = vshrl.u32 %v176, 7
        %v178 = vsub.s32 0, %v177
        %v179 = vrot.slane %v174, %v178
        %v181 = vadd.f32 %v173, %v179
        %182 = vst [vmem:[%s169] sm:$0x3] %v181
        %s183 = sand.u32 %s79, 1
        %s184 = scalar_lea.sflag [#allocation4], %s183
        %s185 = sand.u32 %s79, 1
        %s186 = smul.addr %s185, 2
        %s187 = scalar_lea.vmem [#allocation5], %s186
        // Predicated region
        $region33: #{tpu_custom_call.1} parent=27 // pred_check
          %p188 = pneg %p89
        $region34: #{tpu_custom_call.1} parent=27 // pred_check_branch
          %190 = sbr.rel (%p188) target = $region36
        $region35: #{tpu_custom_call.1} parent=27 // pred_region
          %s192 = ssub.s32 32, 32
          %193 = vsyncadd %s184, %s192
          %s194 = smul.addr %s19, 32
          %s195 = scalar_lea.hbm %s2, %s194
          %s197 = sshll.u32 %s187, 4
          %s198 = int_to_ptr.vmem [resolvable:$true] %s197
          %200 = dma.vmem_to_hbm [thread:$0]  %s198, 32, %s195, %s184
        $region36: #{tpu_custom_call.1} parent=27 // pred_fallthru
          _
      $region28: #{tpu_custom_call.1} parent=5 // pred_fallthru
        _
      %p201 = scmp.le.s32.totalorder 2, %s14
      // Predicated region
      $region37: #{tpu_custom_call.1} parent=5 // pred_check
        %p202 = pneg %p201
      $region38: #{tpu_custom_call.1} parent=5 // pred_check_branch
        %204 = sbr.rel (%p202) target = $region40
      $region39: #{tpu_custom_call.1} parent=5 // pred_region
        %s205 = ssub.s32 %s14, 2
        // Predicated region
        $region41: #{tpu_custom_call.1} parent=39 // pred_check
          %p206 = pneg %p95
        $region42: #{tpu_custom_call.1} parent=39 // pred_check_branch
          %208 = sbr.rel (%p206) target = $region44
        $region43: #{tpu_custom_call.1} parent=39 // pred_region
          %s209 = sand.u32 %s80, 1
          %s210 = scalar_lea.sflag [#allocation4], %s209
          %s211 = sand.u32 %s80, 1
          %s212 = smul.addr %s211, 2
          %s213 = scalar_lea.vmem [#allocation5], %s212
          %214 = dma.done %s210, 32
        $region44: #{tpu_custom_call.1} parent=39 // pred_fallthru
          _
      $region40: #{tpu_custom_call.1} parent=5 // pred_fallthru
        _
    $region6: #{tpu_custom_call.1} parent=1 // loop_footer
      %s18 = sadd.s32 1, %s14
    $region7: #{tpu_custom_call.1} parent=1 // loop_footer_branch
      %13 = sbr.rel target = $region3
    $region8: #{tpu_custom_call.1} parent=1 // loop_exit
      _
    %215 = vsyncpa [#allocation3], 1
    %s216 = scalar_lea.sflag [#allocation3], 1
    %217 = vsyncpa %s216, 1
    %218 = vsyncpa [#allocation4], 1
    %s219 = scalar_lea.sflag [#allocation4], 1
    %220 = vsyncpa %s219, 1

</llo_original>
